<compile_context>
chip_gen: v5e
topology: v5e:2x2
jax: 0.10.0
libtpu: 0.0.40
codegen_flags: <defaults>
</compile_context>

<pallas_src>
import functools

import jax
import jax.numpy as jnp
from jax.experimental import pallas as pl
from jax.experimental.pallas import tpu as pltpu

LANE = 128
SUB = 8


def _round_up(x, m):
    return ((x + m - 1) // m) * m


def mlp_pp_kernel(x_ref, w1_ref, w2_ref, wo_ref, b_ref, o_ref, *, h2_p, c_p):
    f32, bf16 = jnp.float32, jnp.bfloat16

    # layer 1 (block-diag env|mask; layer-1 biases folded in via const-1 lane)
    h = jnp.dot(x_ref[...], w1_ref[...], preferred_element_type=f32)
    h = jnp.maximum(h, 0.0).astype(bf16)

    # layer 2 (block-diag env|mask) + f32 bias row 0 = [b2e | b2m]
    e = jnp.dot(h, w2_ref[...], preferred_element_type=f32) + b_ref[0:1, :h2_p]

    # out layer: cat(e_env, e_msk) @ Wo + bo   (e already IS the concatenation)
    out = jnp.dot(e.astype(bf16), wo_ref[...], preferred_element_type=f32)
    o_ref[...] = (out + b_ref[1:2, :c_p]).astype(o_ref.dtype)


def pack_params(params, *, input_dim, hidden_dim, num_classes,
                quantized_mask_bins=1, quantize_encounter_rates=True):
    """One-time packing of the PyTorch-style weights (pre-transposed [in,out])
    into padded bf16 block-diagonal matrices.  Call once, reuse every step."""
    f32, bf16 = jnp.float32, jnp.bfloat16
    H, C, n = hidden_dim, num_classes, quantized_mask_bins
    De = input_dim
    Dm = (n + 2) * C if quantize_encounter_rates else C
    Din = De + Dm + 1                      # +1 = constant-one lane for layer-1 bias
    Din_p = _round_up(Din, LANE)
    H2 = 2 * H
    H2_p = _round_up(H2, LANE)
    C_p = _round_up(C, LANE)
    LB = max(H2_p, C_p)

    # layer 1: blockdiag(W1e, W1m); biases folded into the const-1 input row
    w1 = jnp.zeros((Din_p, H2_p), f32)
    w1 = w1.at[:De, :H].set(params["w1e"])
    w1 = w1.at[De:De + Dm, H:H2].set(params["w1m"])
    w1 = w1.at[De + Dm, :H].set(params["b1e"])
    w1 = w1.at[De + Dm, H:H2].set(params["b1m"])

    # layer 2: blockdiag(W2e, W2m)
    w2 = jnp.zeros((H2_p, H2_p), f32)
    w2 = w2.at[:H, :H].set(params["w2e"])
    w2 = w2.at[H:H2, H:H2].set(params["w2m"])

    # out layer: original [2H, C] already matches cat(env, mask) ordering
    wo = jnp.zeros((H2_p, C_p), f32)
    wo = wo.at[:H2, :C].set(params["wo"])

    # single packed bias array: row 0 = [b2e | b2m], row 1 = bo (f32 adds)
    bias = jnp.zeros((SUB, LB), f32)
    bias = bias.at[0, :H].set(params["b2e"])
    bias = bias.at[0, H:H2].set(params["b2m"])
    bias = bias.at[1, :C].set(params["bo"])

    return dict(
        w1=w1.astype(bf16), w2=w2.astype(bf16), wo=wo.astype(bf16), bias=bias,
        dims=dict(De=De, Dm=Dm, Din_p=Din_p, H2_p=H2_p, C=C, C_p=C_p,
                  n=n, quantize=quantize_encounter_rates))


def make_forward(packed, *, tm_max=512):
    dims = packed["dims"]
    Din_p, H2_p, C, C_p = dims["Din_p"], dims["H2_p"], dims["C"], dims["C_p"]
    n, quantize = dims["n"], dims["quantize"]
    w1, w2, wo, bias = packed["w1"], packed["w2"], packed["wo"], packed["bias"]
    f32, bf16 = jnp.float32, jnp.bfloat16

    kernel = functools.partial(mlp_pp_kernel, h2_p=H2_p, c_p=C_p)

    @jax.jit
    def forward(x, mask_q):
        B = x.shape[0]

        # ---- mask preprocessing (cheap elementwise prep, plain JAX) ----
        # TODO(synk): custom_replace_n is not defined in the spec; using the
        # standard {-1 -> bin 0, 0 -> bin 1, k/n -> bin k+1} mapping (one_hot(n+2)).
        mq = jnp.where(mask_q == -2.0, -1.0, mask_q)
        if quantize:
            mq = jnp.where(mq > 0, jnp.ceil(mq * n) / n, mq)
            idx = jnp.where(mq < 0, 0,
                            jnp.where(mq == 0, 1,
                                      jnp.round(mq * n).astype(jnp.int32) + 1))
            mask_in = jax.nn.one_hot(idx, n + 2, dtype=f32).reshape(B, -1)
        else:
            mask_in = mq.astype(f32)

        # pack [x | mask | 1] into one lane-dense input row, pad to (B_p, Din_p)
        packed_in = jnp.concatenate(
            [x.astype(f32), mask_in, jnp.ones((B, 1), f32)], axis=1)

        # tile sizing: >= 2 grid steps when possible (v7x megacore), large TM
        # otherwise (amortizes MXU weight pushes on v5e/v6e).
        TM = min(tm_max, max(SUB, _round_up(pl.cdiv(B, 2), SUB)))
        B_p = _round_up(B, TM)
        x_packed = jnp.pad(
            packed_in, ((0, B_p - B), (0, Din_p - packed_in.shape[1]))
        ).astype(bf16)

        batch_spec = lambda shape: pl.BlockSpec(shape, lambda i: (i, 0))
        resident = lambda shape: pl.BlockSpec(shape, lambda i: (0, 0))

        out = pl.pallas_call(
            kernel,
            out_shape=jax.ShapeDtypeStruct((B_p, C_p), f32),
            grid=(B_p // TM,),
            in_specs=[
                batch_spec((TM, Din_p)),            # streamed per batch tile
                resident((Din_p, H2_p)),            # W1 (block-diag, b1 folded)
                resident((H2_p, H2_p)),             # W2 (block-diag)
                resident((H2_p, C_p)),              # Wo
                resident((SUB, bias.shape[1])),     # packed b2 / bo
            ],
            out_specs=batch_spec((TM, C_p)),
            compiler_params=pltpu.CompilerParams(
                dimension_semantics=("parallel",),
                vmem_limit_bytes=16 << 20,
            ),
        )(x_packed, w1, w2, wo, bias)

        return out[:B, :C]

    return forward


def _reference(x, mask_q, params, *, n=1, quantize=True):
    """Plain-JAX reference mirroring the kernel math (bf16 operands,
    f32 accumulation, layer-1 biases rounded to bf16 since they are folded
    into the bf16 packed weights)."""
    f32, bf16 = jnp.float32, jnp.bfloat16
    B = x.shape[0]
    mq = jnp.where(mask_q == -2.0, -1.0, mask_q)
    if quantize:
        mq = jnp.where(mq > 0, jnp.ceil(mq * n) / n, mq)
        idx = jnp.where(mq < 0, 0,
                        jnp.where(mq == 0, 1,
                                  jnp.round(mq * n).astype(jnp.int32) + 1))
        mask_in = jax.nn.one_hot(idx, n + 2, dtype=f32).reshape(B, -1)
    else:
        mask_in = mq.astype(f32)

    def dot(a, w):
        return jnp.dot(a.astype(bf16), w.astype(bf16), preferred_element_type=f32)

    b1e = params["b1e"].astype(bf16).astype(f32)
    b1m = params["b1m"].astype(bf16).astype(f32)
    h_env = jnp.maximum(dot(x, params["w1e"]) + b1e, 0.0).astype(bf16)
    h_msk = jnp.maximum(dot(mask_in, params["w1m"]) + b1m, 0.0).astype(bf16)
    e_env = dot(h_env, params["w2e"]) + params["b2e"]
    e_msk = dot(h_msk, params["w2m"]) + params["b2m"]
    cat = jnp.concatenate([e_env, e_msk], axis=1)
    return dot(cat, params["wo"]) + params["bo"]


if __name__ == "__main__":
    batch = 8
    input_dim = 24
    hidden_dim = 64
    num_classes = 10
    n_bins = 1  # quantized_mask_bins default

    key = jax.random.PRNGKey(0)
    keys = jax.random.split(key, 12)

    def init_linear(kw, kb, fan_in, fan_out):
        bound = 1.0 / jnp.sqrt(jnp.float32(fan_in))
        w = jax.random.uniform(kw, (fan_in, fan_out), jnp.float32, -bound, bound)
        b = jax.random.uniform(kb, (fan_out,), jnp.float32, -bound, bound)
        return w, b

    mask_in_dim = (n_bins + 2) * num_classes
    w1e, b1e = init_linear(keys[0], keys[1], input_dim, hidden_dim)
    w2e, b2e = init_linear(keys[2], keys[3], hidden_dim, hidden_dim)
    w1m, b1m = init_linear(keys[4], keys[5], mask_in_dim, hidden_dim)
    w2m, b2m = init_linear(keys[6], keys[7], hidden_dim, hidden_dim)
    wo, bo = init_linear(keys[8], keys[9], 2 * hidden_dim, num_classes)

    params = dict(w1e=w1e, b1e=b1e, w2e=w2e, b2e=b2e,
                  w1m=w1m, b1m=b1m, w2m=w2m, b2m=b2m, wo=wo, bo=bo)

    x = jax.random.normal(keys[10], (batch, input_dim), jnp.float32)

    # mask_q values: mix of -2, -1, 0 and positive rates in (0, 1]
    cat_id = jax.random.randint(keys[11], (batch, num_classes), 0, 4)
    pos = jax.random.uniform(jax.random.fold_in(key, 99),
                             (batch, num_classes), jnp.float32, 0.05, 1.0)
    mask_q = jnp.where(cat_id == 0, -2.0,
              jnp.where(cat_id == 1, -1.0,
               jnp.where(cat_id == 2, 0.0, pos)))

    # pack weights ONCE (hoisted out of the per-call path), then run forward
    packed = pack_params(params, input_dim=input_dim, hidden_dim=hidden_dim,
                         num_classes=num_classes, quantized_mask_bins=n_bins,
                         quantize_encounter_rates=True)
    forward = make_forward(packed)

    y = forward(x, mask_q)
    jax.block_until_ready(y)

    y_ref = _reference(x, mask_q, params, n=n_bins, quantize=True)
    assert y.shape == (batch, num_classes)
    max_err = float(jnp.max(jnp.abs(y - y_ref)))
    assert jnp.allclose(y, y_ref, atol=2e-3, rtol=2e-3), max_err

    print("KERNEL_OK")
</pallas_src>

<mosaic_0001>
module attributes {stable_mosaic.version = 11 : i64} {
  func.func @mlp_pp_kernel(%arg0: i32, %arg1: memref<8x128xbf16, #tpu.memory_space<vmem>>, %arg2: memref<128x128xbf16, #tpu.memory_space<vmem>>, %arg3: memref<128x128xbf16, #tpu.memory_space<vmem>>, %arg4: memref<128x128xbf16, #tpu.memory_space<vmem>>, %arg5: memref<8x128xf32, #tpu.memory_space<vmem>>, %arg6: memref<8x128xf32, #tpu.memory_space<vmem>>) attributes {dimension_semantics = [#tpu.dimension_semantics<parallel>], iteration_bounds = array<i64: 1>, scalar_prefetch = 0 : i64, scratch_operands = 0 : i64, tpu.core_type = #tpu.core_type<tc>, window_params = [{transform_indices = @transform_0, window_bounds = array<i64: 8, 128>}, {pipeline_mode = #tpu.pipeline_mode<synchronous>, transform_indices = @transform_1, window_bounds = array<i64: 128, 128>}, {pipeline_mode = #tpu.pipeline_mode<synchronous>, transform_indices = @transform_2, window_bounds = array<i64: 128, 128>}, {pipeline_mode = #tpu.pipeline_mode<synchronous>, transform_indices = @transform_3, window_bounds = array<i64: 128, 128>}, {pipeline_mode = #tpu.pipeline_mode<synchronous>, transform_indices = @transform_4, window_bounds = array<i64: 8, 128>}, {transform_indices = @transform_5, window_bounds = array<i64: 8, 128>}]} {
    %c0 = arith.constant 0 : index
    %c0_0 = arith.constant 0 : index
    %0 = vector.load %arg1[%c0, %c0_0] : memref<8x128xbf16, #tpu.memory_space<vmem>>, vector<8x128xbf16>
    %c0_1 = arith.constant 0 : index
    %c0_2 = arith.constant 0 : index
    %1 = vector.load %arg2[%c0_1, %c0_2] : memref<128x128xbf16, #tpu.memory_space<vmem>>, vector<128x128xbf16>
    %cst = arith.constant dense<0.000000e+00> : vector<8x128xf32>
    %2 = tpu.matmul %0, %1, %cst {dimension_numbers = #tpu.dot_dimension_numbers<[1], [0], [0], [1], [0, 0, 1, 1], [], []>} : vector<8x128xbf16>, vector<128x128xbf16>, vector<8x128xf32> -> vector<8x128xf32>
    %cst_3 = arith.constant 0.000000e+00 : f32
    %3 = vector.broadcast %cst_3 : f32 to vector<8x128xf32>
    %4 = arith.maximumf %2, %3 : vector<8x128xf32>
    %5 = arith.truncf %4 : vector<8x128xf32> to vector<8x128xbf16>
    %c0_4 = arith.constant 0 : index
    %c0_5 = arith.constant 0 : index
    %6 = vector.load %arg3[%c0_4, %c0_5] : memref<128x128xbf16, #tpu.memory_space<vmem>>, vector<128x128xbf16>
    %cst_6 = arith.constant dense<0.000000e+00> : vector<8x128xf32>
    %7 = tpu.matmul %5, %6, %cst_6 {dimension_numbers = #tpu.dot_dimension_numbers<[1], [0], [0], [1], [0, 0, 1, 1], [], []>} : vector<8x128xbf16>, vector<128x128xbf16>, vector<8x128xf32> -> vector<8x128xf32>
    %c0_7 = arith.constant 0 : index
    %c0_8 = arith.constant 0 : index
    %8 = vector.load %arg5[%c0_7, %c0_8] : memref<8x128xf32, #tpu.memory_space<vmem>>, vector<1x128xf32>
    %9 = vector.broadcast %8 : vector<1x128xf32> to vector<8x128xf32>
    %10 = arith.addf %7, %9 : vector<8x128xf32>
    %11 = arith.truncf %10 : vector<8x128xf32> to vector<8x128xbf16>
    %c0_9 = arith.constant 0 : index
    %c0_10 = arith.constant 0 : index
    %12 = vector.load %arg4[%c0_9, %c0_10] : memref<128x128xbf16, #tpu.memory_space<vmem>>, vector<128x128xbf16>
    %cst_11 = arith.constant dense<0.000000e+00> : vector<8x128xf32>
    %13 = tpu.matmul %11, %12, %cst_11 {dimension_numbers = #tpu.dot_dimension_numbers<[1], [0], [0], [1], [0, 0, 1, 1], [], []>} : vector<8x128xbf16>, vector<128x128xbf16>, vector<8x128xf32> -> vector<8x128xf32>
    %c1 = arith.constant 1 : index
    %c0_12 = arith.constant 0 : index
    %14 = vector.load %arg5[%c1, %c0_12] : memref<8x128xf32, #tpu.memory_space<vmem>>, vector<1x128xf32>
    %15 = vector.broadcast %14 : vector<1x128xf32> to vector<8x128xf32>
    %16 = arith.addf %13, %15 : vector<8x128xf32>
    %c0_13 = arith.constant 0 : index
    %c0_14 = arith.constant 0 : index
    %17 = vector.load %arg6[%c0_13, %c0_14] : memref<8x128xf32, #tpu.memory_space<vmem>>, vector<8x128xf32>
    tpu.vector_store %arg6[%c0_13, %c0_14], %16 {strides = array<i32>} : memref<8x128xf32, #tpu.memory_space<vmem>>, vector<8x128xf32>,
    return
  }
  func.func @transform_0(%arg0: i32) -> (i32, i32) {
    %c0_i32 = arith.constant 0 : i32
    %c0_i32_0 = arith.constant 0 : i32
    return %arg0, %c0_i32 : i32, i32
  }
  func.func @transform_1(%arg0: i32) -> (i32, i32) {
    %c0_i32 = arith.constant 0 : i32
    %c0_i32_0 = arith.constant 0 : i32
    %c0_i32_1 = arith.constant 0 : i32
    return %c0_i32, %c0_i32_0 : i32, i32
  }
  func.func @transform_2(%arg0: i32) -> (i32, i32) {
    %c0_i32 = arith.constant 0 : i32
    %c0_i32_0 = arith.constant 0 : i32
    %c0_i32_1 = arith.constant 0 : i32
    return %c0_i32, %c0_i32_0 : i32, i32
  }
  func.func @transform_3(%arg0: i32) -> (i32, i32) {
    %c0_i32 = arith.constant 0 : i32
    %c0_i32_0 = arith.constant 0 : i32
    %c0_i32_1 = arith.constant 0 : i32
    return %c0_i32, %c0_i32_0 : i32, i32
  }
  func.func @transform_4(%arg0: i32) -> (i32, i32) {
    %c0_i32 = arith.constant 0 : i32
    %c0_i32_0 = arith.constant 0 : i32
    %c0_i32_1 = arith.constant 0 : i32
    return %c0_i32, %c0_i32_0 : i32, i32
  }
  func.func @transform_5(%arg0: i32) -> (i32, i32) {
    %c0_i32 = arith.constant 0 : i32
    %c0_i32_0 = arith.constant 0 : i32
    return %arg0, %c0_i32 : i32, i32
  }
}

</mosaic_0001>

<llo_original>
// kernel: forward.1
$region0: #{forward.1}
  #allocation0 [shape = 'u32[]', space=smem, size = 0x4, offset = 0x4, fixed_abs, tag = 'smem constant byte address 0x4 - core index']
  #allocation1 [shape = 'u32[72,128]{1,0:T(1,128)}', space=vmem, size = 0x9000, scoped, tag = 'internal scratch']
  %s0 = inlined_call_operand.vmem [shape: bf16[8,128], index: 0, kind: input, shape index: {}]
  %s1 = inlined_call_operand.vmem [shape: bf16[128,128], index: 1, kind: input, shape index: {}]
  %s2 = inlined_call_operand.vmem [shape: bf16[128,128], index: 2, kind: input, shape index: {}]
  %s3 = inlined_call_operand.vmem [shape: bf16[128,128], index: 3, kind: input, shape index: {}]
  %s4 = inlined_call_operand.vmem [shape: f32[8,128], index: 4, kind: input, shape index: {}]
  %s5 = inlined_call_operand.hbm [shape: f32[8,128], index: 5, kind: output, shape index: {}]
  %s6 = sld [smem:[#allocation0]]
  $region30: #{forward.1} parent=0
    _
  %s8 = ssub.s32 1, %s6
  %s9 = scalar_select 0, %s8, %s6
  $region1: #{forward.1} parent=0
    #allocation2 [shape = 'u8[4096]{0}', space=vmem, size = 0x1000, scoped, tag = 'output window, operand 0, single buffered']
    #allocation3 [shape = 's32[1]{0}', space=sflag, size = 0x4, scoped, tag = 'scoped memory for forward.1']
    %10 = vsyncpa [#allocation3], 0
    // Predicated region
    $region2: #{forward.1} parent=1 // pred_check
      _
    $region3: #{forward.1} parent=1 // pred_check_branch
      %12 = sbr.rel (0) target = $region5
    $region4: #{forward.1} parent=1 // pred_region
      _
    $region5: #{forward.1} parent=1 // pred_fallthru
      _
    // Predicated region
    $region6: #{forward.1} parent=1 // pred_check
      _
    $region7: #{forward.1} parent=1 // pred_check_branch
      %14 = sbr.rel (0) target = $region9
    $region8: #{forward.1} parent=1 // pred_region
      _
    $region9: #{forward.1} parent=1 // pred_fallthru
      _
    // Predicated region
    $region10: #{forward.1} parent=1 // pred_check
      _
    $region11: #{forward.1} parent=1 // pred_check_branch
      %16 = sbr.rel (0) target = $region13
    $region12: #{forward.1} parent=1 // pred_region
      _
    $region13: #{forward.1} parent=1 // pred_fallthru
      _
    // Predicated region
    $region14: #{forward.1} parent=1 // pred_check
      _
    $region15: #{forward.1} parent=1 // pred_check_branch
      %18 = sbr.rel (0) target = $region17
    $region16: #{forward.1} parent=1 // pred_region
      _
    $region17: #{forward.1} parent=1 // pred_fallthru
      _
    // Predicated region
    $region18: #{forward.1} parent=1 // pred_check
      _
    $region19: #{forward.1} parent=1 // pred_check_branch
      %20 = sbr.rel (0) target = $region21
    $region20: #{forward.1} parent=1 // pred_region
      _
    $region21: #{forward.1} parent=1 // pred_fallthru
      _
    %v21 = vld [vmem:[%s0] sm:$0xf]
    %v22 = vld [vmem:[%s1] sm:$0xf]
    %v23 = vld [vmem:[%s1 + $0x4] sm:$0xf]
    %v24 = vld [vmem:[%s1 + $0x8] sm:$0xf]
    %v25 = vld [vmem:[%s1 + $0xc] sm:$0xf]
    %v26 = vld [vmem:[%s1 + $0x10] sm:$0xf]
    %v27 = vld [vmem:[%s1 + $0x14] sm:$0xf]
    %v28 = vld [vmem:[%s1 + $0x18] sm:$0xf]
    %v29 = vld [vmem:[%s1 + $0x1c] sm:$0xf]
    %v30 = vld [vmem:[%s1 + $0x20] sm:$0xf]
    %v31 = vld [vmem:[%s1 + $0x24] sm:$0xf]
    %v32 = vld [vmem:[%s1 + $0x28] sm:$0xf]
    %v33 = vld [vmem:[%s1 + $0x2c] sm:$0xf]
    %v34 = vld [vmem:[%s1 + $0x30] sm:$0xf]
    %v35 = vld [vmem:[%s1 + $0x34] sm:$0xf]
    %v36 = vld [vmem:[%s1 + $0x38] sm:$0xf]
    %v37 = vld [vmem:[%s1 + $0x3c] sm:$0xf]
    %v54 = vunpack.c.l.b16 %v22
    %v55 = vunpack.c.l.b16 %v23
    %v56 = vunpack.c.l.b16 %v24
    %v57 = vunpack.c.l.b16 %v25
    %v58 = vunpack.c.l.b16 %v26
    %v59 = vunpack.c.l.b16 %v27
    %v60 = vunpack.c.l.b16 %v28
    %v61 = vunpack.c.l.b16 %v29
    %v62 = vunpack.c.l.b16 %v30
    %v63 = vunpack.c.l.b16 %v31
    %v64 = vunpack.c.l.b16 %v32
    %v65 = vunpack.c.l.b16 %v33
    %v66 = vunpack.c.l.b16 %v34
    %v67 = vunpack.c.l.b16 %v35
    %v68 = vunpack.c.l.b16 %v36
    %v69 = vunpack.c.l.b16 %v37
    %v70 = vpack.c.b16 %v55, %v54
    %v71 = vpack.c.b16 %v57, %v56
    %v72 = vpack.c.b16 %v59, %v58
    %v73 = vpack.c.b16 %v61, %v60
    %v74 = vpack.c.b16 %v63, %v62
    %v75 = vpack.c.b16 %v65, %v64
    %v76 = vpack.c.b16 %v67, %v66
    %v77 = vpack.c.b16 %v69, %v68
    %86 = vmatpush.bf16.msra.mxu0 %v77
    %87 = vmatpush.bf16.msra.mxu0 %v76
    %88 = vmatpush.bf16.msra.mxu0 %v75
    %89 = vmatpush.bf16.msra.mxu0 %v74
    %90 = vmatpush.bf16.msra.mxu0 %v73
    %91 = vmatpush.bf16.msra.mxu0 %v72
    %92 = vmatpush.bf16.msra.mxu0 %v71
    %93 = vmatpush.bf16.msra.mxu0 %v70
    %94 = vmatmul.bf16.gmra.mxu0 %v21
    %v95 = vpop.f32.mrf.mxu0
    %v96 = vadd.f32 0.0, %v95
    %v97 = vpop.f32.mrf.mxu0
    %98 = vdwg.mxu0
    %v99 = vmax.f32 %v96, 0.0
    %v100 = vpack.c.bf16 %v99, %v99
    %v101 = vld [vmem:[%s2] sm:$0xf]
    %v102 = vld [vmem:[%s2 + $0x4] sm:$0xf]
    %v103 = vld [vmem:[%s2 + $0x8] sm:$0xf]
    %v104 = vld [vmem:[%s2 + $0xc] sm:$0xf]
    %v105 = vld [vmem:[%s2 + $0x10] sm:$0xf]
    %v106 = vld [vmem:[%s2 + $0x14] sm:$0xf]
    %v107 = vld [vmem:[%s2 + $0x18] sm:$0xf]
    %v108 = vld [vmem:[%s2 + $0x1c] sm:$0xf]
    %v109 = vld [vmem:[%s2 + $0x20] sm:$0xf]
    %v110 = vld [vmem:[%s2 + $0x24] sm:$0xf]
    %v111 = vld [vmem:[%s2 + $0x28] sm:$0xf]
    %v112 = vld [vmem:[%s2 + $0x2c] sm:$0xf]
    %v113 = vld [vmem:[%s2 + $0x30] sm:$0xf]
    %v114 = vld [vmem:[%s2 + $0x34] sm:$0xf]
    %v115 = vld [vmem:[%s2 + $0x38] sm:$0xf]
    %v116 = vld [vmem:[%s2 + $0x3c] sm:$0xf]
    %v117 = vld [vmem:[%s4] sm:$0x1]
    %v118 = vperm.slane %v117, 0
    %v135 = vunpack.c.l.b16 %v101
    %v136 = vunpack.c.l.b16 %v102
    %v137 = vunpack.c.l.b16 %v103
    %v138 = vunpack.c.l.b16 %v104
    %v139 = vunpack.c.l.b16 %v105
    %v140 = vunpack.c.l.b16 %v106
    %v141 = vunpack.c.l.b16 %v107
    %v142 = vunpack.c.l.b16 %v108
    %v143 = vunpack.c.l.b16 %v109
    %v144 = vunpack.c.l.b16 %v110
    %v145 = vunpack.c.l.b16 %v111
    %v146 = vunpack.c.l.b16 %v112
    %v147 = vunpack.c.l.b16 %v113
    %v148 = vunpack.c.l.b16 %v114
    %v149 = vunpack.c.l.b16 %v115
    %v150 = vunpack.c.l.b16 %v116
    %v151 = vpack.c.b16 %v136, %v135
    %v152 = vpack.c.b16 %v138, %v137
    %v153 = vpack.c.b16 %v140, %v139
    %v154 = vpack.c.b16 %v142, %v141
    %v155 = vpack.c.b16 %v144, %v143
    %v156 = vpack.c.b16 %v146, %v145
    %v157 = vpack.c.b16 %v148, %v147
    %v158 = vpack.c.b16 %v150, %v149
    %167 = vmatpush.bf16.msra.mxu0 %v158
    %168 = vmatpush.bf16.msra.mxu0 %v157
    %169 = vmatpush.bf16.msra.mxu0 %v156
    %170 = vmatpush.bf16.msra.mxu0 %v155
    %171 = vmatpush.bf16.msra.mxu0 %v154
    %172 = vmatpush.bf16.msra.mxu0 %v153
    %173 = vmatpush.bf16.msra.mxu0 %v152
    %174 = vmatpush.bf16.msra.mxu0 %v151
    %175 = vmatmul.bf16.gmra.mxu0 %v100
    %v176 = vpop.f32.mrf.mxu0
    %v177 = vadd.f32 %v118, %v176
    %v178 = vpop.f32.mrf.mxu0
    %179 = vdwg.mxu0
    %v180 = vpack.c.bf16 %v177, %v177
    %v181 = vld [vmem:[%s3] sm:$0xf]
    %v182 = vld [vmem:[%s3 + $0x4] sm:$0xf]
    %v183 = vld [vmem:[%s3 + $0x8] sm:$0xf]
    %v184 = vld [vmem:[%s3 + $0xc] sm:$0xf]
    %v185 = vld [vmem:[%s3 + $0x10] sm:$0xf]
    %v186 = vld [vmem:[%s3 + $0x14] sm:$0xf]
    %v187 = vld [vmem:[%s3 + $0x18] sm:$0xf]
    %v188 = vld [vmem:[%s3 + $0x1c] sm:$0xf]
    %v189 = vld [vmem:[%s3 + $0x20] sm:$0xf]
    %v190 = vld [vmem:[%s3 + $0x24] sm:$0xf]
    %v191 = vld [vmem:[%s3 + $0x28] sm:$0xf]
    %v192 = vld [vmem:[%s3 + $0x2c] sm:$0xf]
    %v193 = vld [vmem:[%s3 + $0x30] sm:$0xf]
    %v194 = vld [vmem:[%s3 + $0x34] sm:$0xf]
    %v195 = vld [vmem:[%s3 + $0x38] sm:$0xf]
    %v196 = vld [vmem:[%s3 + $0x3c] sm:$0xf]
    %v197 = vld [vmem:[%s4 + $0x1] sm:$0x1]
    %v198 = vperm.slane %v197, 0
    %v215 = vunpack.c.l.b16 %v181
    %v216 = vunpack.c.l.b16 %v182
    %v217 = vunpack.c.l.b16 %v183
    %v218 = vunpack.c.l.b16 %v184
    %v219 = vunpack.c.l.b16 %v185
    %v220 = vunpack.c.l.b16 %v186
    %v221 = vunpack.c.l.b16 %v187
    %v222 = vunpack.c.l.b16 %v188
    %v223 = vunpack.c.l.b16 %v189
    %v224 = vunpack.c.l.b16 %v190
    %v225 = vunpack.c.l.b16 %v191
    %v226 = vunpack.c.l.b16 %v192
    %v227 = vunpack.c.l.b16 %v193
    %v228 = vunpack.c.l.b16 %v194
    %v229 = vunpack.c.l.b16 %v195
    %v230 = vunpack.c.l.b16 %v196
    %v231 = vpack.c.b16 %v216, %v215
    %v232 = vpack.c.b16 %v218, %v217
    %v233 = vpack.c.b16 %v220, %v219
    %v234 = vpack.c.b16 %v222, %v221
    %v235 = vpack.c.b16 %v224, %v223
    %v236 = vpack.c.b16 %v226, %v225
    %v237 = vpack.c.b16 %v228, %v227
    %v238 = vpack.c.b16 %v230, %v229
    %247 = vmatpush.bf16.msra.mxu0 %v238
    %248 = vmatpush.bf16.msra.mxu0 %v237
    %249 = vmatpush.bf16.msra.mxu0 %v236
    %250 = vmatpush.bf16.msra.mxu0 %v235
    %251 = vmatpush.bf16.msra.mxu0 %v234
    %252 = vmatpush.bf16.msra.mxu0 %v233
    %253 = vmatpush.bf16.msra.mxu0 %v232
    %254 = vmatpush.bf16.msra.mxu0 %v231
    %255 = vmatmul.bf16.gmra.mxu0 %v180
    %v256 = vpop.f32.mrf.mxu0
    %v257 = vadd.f32 %v198, %v256
    %v258 = vpop.f32.mrf.mxu0
    %259 = vdwg.mxu0
    %260 = vst [vmem:[#allocation2] sm:$0xff] %v257
    // Predicated region
    $region22: #{forward.1} parent=1 // pred_check
      _
    $region23: #{forward.1} parent=1 // pred_check_branch
      %262 = sbr.rel (0) target = $region25
    $region24: #{forward.1} parent=1 // pred_region
      %264 = vsyncadd [#allocation3], 0
      %s266 = sshll.u32 [#allocation2], 4
      %s267 = int_to_ptr.vmem [resolvable:$true] %s266
      %s268 = sshll.u32 %s5, 4
      %s269 = int_to_ptr.hbm [resolvable:$true] %s268
      %271 = dma.vmem_to_hbm [thread:$0]  %s267, 128, %s269, [#allocation3]
    $region25: #{forward.1} parent=1 // pred_fallthru
      _
    // Predicated region
    $region26: #{forward.1} parent=1 // pred_check
      _
    $region27: #{forward.1} parent=1 // pred_check_branch
      %273 = sbr.rel (0) target = $region29
    $region28: #{forward.1} parent=1 // pred_region
      %275 = dma.done [#allocation3], 128
    $region29: #{forward.1} parent=1 // pred_fallthru
      _
    %276 = vsyncpa [#allocation3], 1

</llo_original>
